<compile_context>
chip_gen: v7x
topology: tpu7x:2x2x1
jax: 0.10.0
libtpu: 0.0.40
codegen_flags: <defaults>
</compile_context>

<pallas_src>
import math

import jax
import jax.numpy as jnp
from jax.experimental import pallas as pl
from jax.experimental.pallas import tpu as pltpu

# delta2bbox defaults (means / stds / wh_ratio_clip from the PyTorch module).
_MEANS = (0.0, 0.0, 0.0, 0.0)
_STDS = (1.0, 1.0, 1.0, 1.0)
_WH_RATIO_CLIP = 16.0 / 1000.0
_MAX_RATIO = abs(math.log(_WH_RATIO_CLIP))

# Denormalization is the identity with the default means/stds -> skip it at
# trace time (no wasted VPU FMAs); kept generic for non-default settings.
_APPLY_DENORM = any(m != 0.0 for m in _MEANS) or any(s != 1.0 for s in _STDS)


def _delta2bbox_kernel(rois_ref, deltas_ref, out_ref):
    d = deltas_ref[...]                                    # [T, C], C = 4*K
    t, c = d.shape

    # Single iota; lane masks via bit tests (cheaper than two compares + c4).
    lane = jax.lax.broadcasted_iota(jnp.int32, (t, c), 1)
    is_lo = (lane & 2) == 0  # lanes 0,1 of each 4-group (dx/dy in; x1/y1 out)
    is_x = (lane & 1) == 0   # lanes whose coordinate is x (group lanes 0, 2)

    if _APPLY_DENORM:  # compile-time conditional; identity with defaults
        c4 = lane & 3
        std = jnp.where(c4 == 0, _STDS[0],
              jnp.where(c4 == 1, _STDS[1],
              jnp.where(c4 == 2, _STDS[2], _STDS[3]))).astype(d.dtype)
        mean = jnp.where(c4 == 0, _MEANS[0],
               jnp.where(c4 == 1, _MEANS[1],
               jnp.where(c4 == 2, _MEANS[2], _MEANS[3]))).astype(d.dtype)
        d = d * std + mean

    # Bring the partner pair of each 4-lane group into place (XLU rolls):
    #   shift_d holds (dx, dy, dx, dy); size_d holds (dw, dh, dw, dh).
    # pltpu.roll matches jnp.roll: roll(x, s)[i] == x[i - s]; use c-2 for -2.
    shift_d = jnp.where(is_lo, d, pltpu.roll(d, 2, axis=1))
    size_d = jnp.where(is_lo, pltpu.roll(d, c - 2, axis=1), d)
    size_d = jnp.clip(size_d, -_MAX_RATIO, _MAX_RATIO)

    # Proposal centers / sizes, [T, 1] -> broadcast onto lanes via select.
    r = rois_ref[...]                                      # [T, 4]
    px = (r[:, 0:1] + r[:, 2:3]) * 0.5
    py = (r[:, 1:2] + r[:, 3:4]) * 0.5
    pw = r[:, 2:3] - r[:, 0:1] + 1.0
    ph = r[:, 3:4] - r[:, 1:2] + 1.0

    p_center = jnp.where(is_x, px, py)                     # [T, C]
    p_size = jnp.where(is_x, pw, ph)                       # [T, C]

    # x1 = gx - gw/2 + 0.5 = gx - 0.5*(gw - 1);  x2 = gx + 0.5*(gw - 1).
    sign = jnp.where(is_lo, jnp.float32(-0.5), jnp.float32(0.5))
    out_ref[...] = (p_center + p_size * shift_d
                    + sign * (p_size * jnp.exp(size_d) - 1.0))


def _round_up8(x):
    return ((x + 7) // 8) * 8


def delta2bbox_pallas(rois, deltas, *, target_step_bytes=3 << 20):
    """rois: [N, 4] float32, deltas: [N, 4*K] float32 -> bboxes [N, 4*K]."""
    rois = rois.astype(jnp.float32)
    deltas = deltas.astype(jnp.float32)
    n, c = deltas.shape
    assert c % 4 == 0 and rois.shape == (n, 4)
    # NOTE: lane-dense (unmasked) output stores require c % 128 == 0 (K = 32,
    # 64, ...).  Other K still compute correctly but with masked tail stores.

    # VMEM bytes per row across in+out+rois; the (tn, 4) rois block pads to
    # (tn, 128) lanes in VMEM even though its DMA only moves 16 B/row.
    row_bytes = 4 * (c + c + 128)

    try:
        vmem_cap = int(getattr(pltpu.get_tpu_info(), "vmem_capacity_bytes",
                               64 << 20))
    except Exception:  # pragma: no cover - conservative fallback
        vmem_cap = 64 << 20                   # v7x per-TC capacity (smallest)
    vmem_budget = vmem_cap // 2               # leave headroom for the compiler

    if n <= 8:
        tn = n                                # single block; equals full dim
    else:
        # Byte-sized tile: ~target_step_bytes of deltas per grid step.
        tn = max(8, (target_step_bytes // (4 * c)) // 8 * 8)
        # Cap by the per-generation VMEM budget (2 pipeline buffers).
        tn = min(tn, max(8, (vmem_budget // (2 * row_bytes)) // 8 * 8))
        # Keep >= 2 grid steps so v7x's second TensorCore gets work.
        tn = min(tn, _round_up8(pl.cdiv(n, 2)))
    grid = (pl.cdiv(n, tn),)

    vmem_limit = int(min(max(2 * tn * row_bytes + (2 << 20), 16 << 20),
                         vmem_cap))

    cost = pl.CostEstimate(flops=10 * n * c,
                           transcendentals=n * c,
                           bytes_accessed=8 * n * c + 16 * n)

    return pl.pallas_call(
        _delta2bbox_kernel,
        out_shape=jax.ShapeDtypeStruct((n, c), jnp.float32),
        grid=grid,
        in_specs=[
            pl.BlockSpec((tn, 4), lambda i: (i, 0)),   # rois tile
            pl.BlockSpec((tn, c), lambda i: (i, 0)),   # deltas tile
        ],
        out_specs=pl.BlockSpec((tn, c), lambda i: (i, 0)),
        compiler_params=pltpu.CompilerParams(
            dimension_semantics=("parallel",),         # megacore on v7x
            vmem_limit_bytes=vmem_limit),
        cost_estimate=cost,
    )(rois, deltas)


def _delta2bbox_ref(rois, deltas):
    """Pure-JAX reference mirroring the PyTorch delta2bbox (max_shape=None)."""
    n, c = deltas.shape
    k = c // 4
    means = jnp.tile(jnp.asarray(_MEANS, jnp.float32), (1, k))
    stds = jnp.tile(jnp.asarray(_STDS, jnp.float32), (1, k))
    denorm = deltas * stds + means
    dx = denorm[:, 0::4]
    dy = denorm[:, 1::4]
    dw = jnp.clip(denorm[:, 2::4], -_MAX_RATIO, _MAX_RATIO)
    dh = jnp.clip(denorm[:, 3::4], -_MAX_RATIO, _MAX_RATIO)
    px = ((rois[:, 0] + rois[:, 2]) * 0.5)[:, None]
    py = ((rois[:, 1] + rois[:, 3]) * 0.5)[:, None]
    pw = (rois[:, 2] - rois[:, 0] + 1.0)[:, None]
    ph = (rois[:, 3] - rois[:, 1] + 1.0)[:, None]
    gw = pw * jnp.exp(dw)
    gh = ph * jnp.exp(dh)
    gx = px + pw * dx
    gy = py + ph * dy
    x1 = gx - gw * 0.5 + 0.5
    y1 = gy - gh * 0.5 + 0.5
    x2 = gx + gw * 0.5 - 0.5
    y2 = gy + gh * 0.5 - 0.5
    return jnp.stack([x1, y1, x2, y2], axis=-1).reshape(n, c)


def _make_inputs(key, n, k_cls):
    k1, k2, k3 = jax.random.split(key, 3)
    xy1 = jax.random.uniform(k1, (n, 2), jnp.float32, 0.0, 50.0)
    wh = jax.random.uniform(k2, (n, 2), jnp.float32, 1.0, 60.0)
    rois = jnp.concatenate([xy1, xy1 + wh], axis=-1)          # x1<x2, y1<y2
    deltas = jax.random.normal(k3, (n, 4 * k_cls), jnp.float32) * 0.5
    return rois, deltas


if __name__ == "__main__":
    key = jax.random.PRNGKey(0)
    ka, kb, kc = jax.random.split(key, 3)

    # Lane-dense case: 64 rois, 32 classes -> deltas [64, 128], grid = 2 steps.
    rois, deltas = _make_inputs(ka, 64, 32)
    out = jax.block_until_ready(delta2bbox_pallas(rois, deltas))
    assert out.shape == deltas.shape
    assert jnp.allclose(out, _delta2bbox_ref(rois, deltas), atol=1e-4, rtol=1e-4)

    # Partial last block (n not a multiple of the 8-aligned tile).
    rois2, deltas2 = _make_inputs(kb, 50, 32)
    out2 = jax.block_until_ready(delta2bbox_pallas(rois2, deltas2))
    assert jnp.allclose(out2, _delta2bbox_ref(rois2, deltas2), atol=1e-4, rtol=1e-4)

    # Tiny-N single-block path (tn == n == full dim).
    rois3, deltas3 = _make_inputs(kc, 7, 32)
    out3 = jax.block_until_ready(delta2bbox_pallas(rois3, deltas3))
    assert jnp.allclose(out3, _delta2bbox_ref(rois3, deltas3), atol=1e-4, rtol=1e-4)

    print("KERNEL_OK")
</pallas_src>

<mosaic_0001>
module attributes {stable_mosaic.version = 11 : i64} {
  func.func @_delta2bbox_kernel(%arg0: i32, %arg1: memref<32x4xf32, #tpu.memory_space<vmem>>, %arg2: memref<32x128xf32, #tpu.memory_space<vmem>>, %arg3: memref<32x128xf32, #tpu.memory_space<vmem>>) attributes {dimension_semantics = [#tpu.dimension_semantics<parallel>], iteration_bounds = array<i64: 2>, scalar_prefetch = 0 : i64, scratch_operands = 0 : i64, tpu.core_type = #tpu.core_type<tc>, window_params = [{transform_indices = @transform_0, window_bounds = array<i64: 32, 4>}, {transform_indices = @transform_1, window_bounds = array<i64: 32, 128>}, {transform_indices = @transform_2, window_bounds = array<i64: 32, 128>}]} {
    %c0 = arith.constant 0 : index
    %c0_0 = arith.constant 0 : index
    %0 = vector.load %arg2[%c0, %c0_0] : memref<32x128xf32, #tpu.memory_space<vmem>>, vector<32x128xf32>
    %1 = tpu.iota {dimensions = array<i32: 1>} : vector<32x128xi32>
    %c2_i32 = arith.constant 2 : i32
    %2 = vector.broadcast %c2_i32 : i32 to vector<32x128xi32>
    %3 = arith.andi %1, %2 : vector<32x128xi32>
    %c0_i32 = arith.constant 0 : i32
    %4 = vector.broadcast %c0_i32 : i32 to vector<32x128xi32>
    %5 = arith.cmpi eq, %3, %4 : vector<32x128xi32>
    %c1_i32 = arith.constant 1 : i32
    %6 = vector.broadcast %c1_i32 : i32 to vector<32x128xi32>
    %7 = arith.andi %1, %6 : vector<32x128xi32>
    %c0_i32_1 = arith.constant 0 : i32
    %8 = vector.broadcast %c0_i32_1 : i32 to vector<32x128xi32>
    %9 = arith.cmpi eq, %7, %8 : vector<32x128xi32>
    %c2_i32_2 = arith.constant 2 : i32
    %10 = tpu.dynamic_rotate %0 by %c2_i32_2 dim 1 : vector<32x128xf32>, i32 -> vector<32x128xf32>
    %11 = arith.select %5, %0, %10 : vector<32x128xi1>, vector<32x128xf32>
    %c126_i32 = arith.constant 126 : i32
    %12 = tpu.dynamic_rotate %0 by %c126_i32 dim 1 : vector<32x128xf32>, i32 -> vector<32x128xf32>
    %13 = arith.select %5, %12, %0 : vector<32x128xi1>, vector<32x128xf32>
    %cst = arith.constant -4.13516665 : f32
    %cst_3 = arith.constant 4.13516665 : f32
    %14 = vector.broadcast %cst : f32 to vector<32x128xf32>
    %15 = arith.maximumf %14, %13 : vector<32x128xf32>
    %16 = vector.broadcast %cst_3 : f32 to vector<32x128xf32>
    %17 = arith.minimumf %16, %15 : vector<32x128xf32>
    %c0_4 = arith.constant 0 : index
    %c0_5 = arith.constant 0 : index
    %18 = vector.load %arg1[%c0_4, %c0_5] : memref<32x4xf32, #tpu.memory_space<vmem>>, vector<32x4xf32>
    %19 = vector.extract_strided_slice %18 {offsets = [0, 0], sizes = [32, 1], strides = [1, 1]} : vector<32x4xf32> to vector<32x1xf32>
    %20 = vector.extract_strided_slice %18 {offsets = [0, 2], sizes = [32, 1], strides = [1, 1]} : vector<32x4xf32> to vector<32x1xf32>
    %21 = arith.addf %19, %20 : vector<32x1xf32>
    %cst_6 = arith.constant 5.000000e-01 : f32
    %22 = vector.broadcast %cst_6 : f32 to vector<32x1xf32>
    %23 = arith.mulf %21, %22 : vector<32x1xf32>
    %24 = vector.extract_strided_slice %18 {offsets = [0, 1], sizes = [32, 1], strides = [1, 1]} : vector<32x4xf32> to vector<32x1xf32>
    %25 = vector.extract_strided_slice %18 {offsets = [0, 3], sizes = [32, 1], strides = [1, 1]} : vector<32x4xf32> to vector<32x1xf32>
    %26 = arith.addf %24, %25 : vector<32x1xf32>
    %cst_7 = arith.constant 5.000000e-01 : f32
    %27 = vector.broadcast %cst_7 : f32 to vector<32x1xf32>
    %28 = arith.mulf %26, %27 : vector<32x1xf32>
    %29 = vector.extract_strided_slice %18 {offsets = [0, 2], sizes = [32, 1], strides = [1, 1]} : vector<32x4xf32> to vector<32x1xf32>
    %30 = vector.extract_strided_slice %18 {offsets = [0, 0], sizes = [32, 1], strides = [1, 1]} : vector<32x4xf32> to vector<32x1xf32>
    %31 = arith.subf %29, %30 : vector<32x1xf32>
    %cst_8 = arith.constant 1.000000e+00 : f32
    %32 = vector.broadcast %cst_8 : f32 to vector<32x1xf32>
    %33 = arith.addf %31, %32 : vector<32x1xf32>
    %34 = vector.extract_strided_slice %18 {offsets = [0, 3], sizes = [32, 1], strides = [1, 1]} : vector<32x4xf32> to vector<32x1xf32>
    %35 = vector.extract_strided_slice %18 {offsets = [0, 1], sizes = [32, 1], strides = [1, 1]} : vector<32x4xf32> to vector<32x1xf32>
    %36 = arith.subf %34, %35 : vector<32x1xf32>
    %cst_9 = arith.constant 1.000000e+00 : f32
    %37 = vector.broadcast %cst_9 : f32 to vector<32x1xf32>
    %38 = arith.addf %36, %37 : vector<32x1xf32>
    %39 = vector.shape_cast %23 : vector<32x1xf32> to vector<32x1xf32>
    %40 = vector.broadcast %39 : vector<32x1xf32> to vector<32x128xf32>
    %41 = vector.shape_cast %28 : vector<32x1xf32> to vector<32x1xf32>
    %42 = vector.broadcast %41 : vector<32x1xf32> to vector<32x128xf32>
    %43 = arith.select %9, %40, %42 : vector<32x128xi1>, vector<32x128xf32>
    %44 = vector.shape_cast %33 : vector<32x1xf32> to vector<32x1xf32>
    %45 = vector.broadcast %44 : vector<32x1xf32> to vector<32x128xf32>
    %46 = vector.shape_cast %38 : vector<32x1xf32> to vector<32x1xf32>
    %47 = vector.broadcast %46 : vector<32x1xf32> to vector<32x128xf32>
    %48 = arith.select %9, %45, %47 : vector<32x128xi1>, vector<32x128xf32>
    %cst_10 = arith.constant -5.000000e-01 : f32
    %cst_11 = arith.constant 5.000000e-01 : f32
    %49 = vector.broadcast %cst_10 : f32 to vector<32x128xf32>
    %50 = vector.broadcast %cst_11 : f32 to vector<32x128xf32>
    %51 = arith.select %5, %49, %50 : vector<32x128xi1>, vector<32x128xf32>
    %52 = arith.mulf %48, %11 : vector<32x128xf32>
    %53 = arith.addf %43, %52 : vector<32x128xf32>
    %54 = math.exp %17 : vector<32x128xf32>
    %55 = arith.mulf %48, %54 : vector<32x128xf32>
    %cst_12 = arith.constant 1.000000e+00 : f32
    %56 = vector.broadcast %cst_12 : f32 to vector<32x128xf32>
    %57 = arith.subf %55, %56 : vector<32x128xf32>
    %58 = arith.mulf %51, %57 : vector<32x128xf32>
    %59 = arith.addf %53, %58 : vector<32x128xf32>
    %c0_13 = arith.constant 0 : index
    %c0_14 = arith.constant 0 : index
    %60 = vector.load %arg3[%c0_13, %c0_14] : memref<32x128xf32, #tpu.memory_space<vmem>>, vector<32x128xf32>
    tpu.vector_store %arg3[%c0_13, %c0_14], %59 {strides = array<i32>} : memref<32x128xf32, #tpu.memory_space<vmem>>, vector<32x128xf32>,
    return
  }
  func.func @transform_0(%arg0: i32) -> (i32, i32) {
    %c0_i32 = arith.constant 0 : i32
    %c0_i32_0 = arith.constant 0 : i32
    return %arg0, %c0_i32 : i32, i32
  }
  func.func @transform_1(%arg0: i32) -> (i32, i32) {
    %c0_i32 = arith.constant 0 : i32
    %c0_i32_0 = arith.constant 0 : i32
    return %arg0, %c0_i32 : i32, i32
  }
  func.func @transform_2(%arg0: i32) -> (i32, i32) {
    %c0_i32 = arith.constant 0 : i32
    %c0_i32_0 = arith.constant 0 : i32
    return %arg0, %c0_i32 : i32, i32
  }
}

</mosaic_0001>

<llo_original>
// kernel: tpu_custom_call.1
$region0: #{tpu_custom_call.1}
  #allocation0 [shape = 'u32[]', space=smem, size = 0x4, offset = 0x4, fixed_abs, tag = 'smem constant byte address 0x4 - core index']
  #allocation1 [shape = 'u32[144,128]{1,0:T(1,128)}', space=vmem, size = 0x12000, scoped, tag = 'internal scratch']
  %s0 = inlined_call_operand.vmem [shape: f32[64,4], index: 0, kind: input, shape index: {}]
  %s1 = inlined_call_operand.vmem [shape: f32[64,128], index: 1, kind: input, shape index: {}]
  %s2 = inlined_call_operand.hbm [shape: f32[64,128], index: 2, kind: output, shape index: {}]
  %s3 = sld [smem:[#allocation0]]
  $region41: #{tpu_custom_call.1} parent=0
    _
  %s5 = ssub.s32 1, %s3
  %s6 = scalar_select 0, %s5, %s3
  $region1: #{tpu_custom_call.1} parent=0
    #allocation2 [shape = 'u8[32768]{0}', space=vmem, size = 0x8000, scoped, tag = 'output window, operand 0']
    #allocation3 [shape = 's32[2]{0}', space=sflag, size = 0x8, scoped, tag = 'scoped memory for tpu_custom_call.1']
    %7 = vsyncpa [#allocation3], 0
    %s8 = scalar_lea.sflag [#allocation3], 1
    %9 = vsyncpa %s8, 0
    loop: start=0, step=1, limit=4
    $region2: #{tpu_custom_call.1} parent=1 // loop_pre_header
      _
    $region3: #{tpu_custom_call.1} parent=1 // loop_header
      %s11 = sphi 0, %s15
      %p12 = scmp.ge.s32.totalorder %s11, 4
      %s21 = sphi 0, %s23
      %s24 = sphi 0, %s21
      %s25 = sphi 0, %s24
      %s41 = sphi 0, %s25
      %s47 = sphi 0, %s49
      %s50 = sphi 0, %s47
      %s51 = sphi 0, %s50
      %s67 = sphi 0, %s51
      %s73 = sphi 0, %s75
      %s76 = sphi 0, %s73
      %s77 = sphi 0, %s76
      %s93 = sphi 0, %s77
    $region4: #{tpu_custom_call.1} parent=1 // loop_header_branch
      %14 = sbr.rel (%p12) target = $region8
    $region5: #{tpu_custom_call.1} parent=1 // loop_body
      %s16 = ssub.s32 %s11, 1
      %s17 = ssub.s32 %s11, 2
      %s18 = sadd.s32 %s11, 1
      %s19 = ssub.s32 %s11, %s18
      %p20 = scmp.eq.s32.totalorder %s19, 0
      %s22 = sadd.s32 %s21, 1
      %s23 = scalar_select %p20, %s21, %s22
      %p26 = pneg %p20
      %p27 = scmp.eq.s32.totalorder %s11, 1
      %p28 = por %p26, %p27
      %p29 = scmp.ne.s32.totalorder %s21, %s24
      %p30 = scmp.eq.s32.totalorder %s11, 0
      %p31 = por %p29, %p30
      %p32 = scmp.ne.s32.totalorder %s21, %s24
      %p33 = scmp.eq.s32.totalorder %s16, 1
      %p34 = por %p32, %p33
      %p35 = scmp.ne.s32.totalorder %s24, %s25
      %p36 = scmp.eq.s32.totalorder %s16, 0
      %p37 = por %p35, %p36
      %p38 = scmp.ne.s32.totalorder %s24, %s25
      %p39 = scmp.eq.s32.totalorder %s17, 1
      %p40 = por %p38, %p39
      %p42 = scmp.ne.s32.totalorder %s25, %s41
      %p43 = scmp.eq.s32.totalorder %s17, 0
      %p44 = por %p42, %p43
      %s45 = ssub.s32 %s11, %s18
      %p46 = scmp.eq.s32.totalorder %s45, 0
      %s48 = sadd.s32 %s47, 1
      %s49 = scalar_select %p46, %s47, %s48
      %p52 = pneg %p46
      %p53 = scmp.eq.s32.totalorder %s11, 1
      %p54 = por %p52, %p53
      %p55 = scmp.ne.s32.totalorder %s47, %s50
      %p56 = scmp.eq.s32.totalorder %s11, 0
      %p57 = por %p55, %p56
      %p58 = scmp.ne.s32.totalorder %s47, %s50
      %p59 = scmp.eq.s32.totalorder %s16, 1
      %p60 = por %p58, %p59
      %p61 = scmp.ne.s32.totalorder %s50, %s51
      %p62 = scmp.eq.s32.totalorder %s16, 0
      %p63 = por %p61, %p62
      %p64 = scmp.ne.s32.totalorder %s50, %s51
      %p65 = scmp.eq.s32.totalorder %s17, 1
      %p66 = por %p64, %p65
      %p68 = scmp.ne.s32.totalorder %s51, %s67
      %p69 = scmp.eq.s32.totalorder %s17, 0
      %p70 = por %p68, %p69
      %s71 = ssub.s32 %s11, %s18
      %p72 = scmp.eq.s32.totalorder %s71, 0
      %s74 = sadd.s32 %s73, 1
      %s75 = scalar_select %p72, %s73, %s74
      %p78 = pneg %p72
      %p79 = scmp.eq.s32.totalorder %s11, 1
      %p80 = por %p78, %p79
      %p81 = scmp.ne.s32.totalorder %s73, %s76
      %p82 = scmp.eq.s32.totalorder %s11, 0
      %p83 = por %p81, %p82
      %p84 = scmp.ne.s32.totalorder %s73, %s76
      %p85 = scmp.eq.s32.totalorder %s16, 1
      %p86 = por %p84, %p85
      %p87 = scmp.ne.s32.totalorder %s76, %s77
      %p88 = scmp.eq.s32.totalorder %s16, 0
      %p89 = por %p87, %p88
      %p90 = scmp.ne.s32.totalorder %s76, %s77
      %p91 = scmp.eq.s32.totalorder %s17, 1
      %p92 = por %p90, %p91
      %p94 = scmp.ne.s32.totalorder %s77, %s93
      %p95 = scmp.eq.s32.totalorder %s17, 0
      %p96 = por %p94, %p95
      %p97 = scmp.le.s32.totalorder 1, %s11
      %p98 = scmp.lt.s32.totalorder %s11, 3
      %p99 = pnand %p97, %p98
      %p100 = pneg %p99
      // Predicated region
      $region9: #{tpu_custom_call.1} parent=5 // pred_check
        _
      $region10: #{tpu_custom_call.1} parent=5 // pred_check_branch
        %102 = sbr.rel (%p99) target = $region12
      $region11: #{tpu_custom_call.1} parent=5 // pred_region
        %s103 = ssub.s32 %s11, 1
      $region12: #{tpu_custom_call.1} parent=5 // pred_fallthru
        _
      %p104 = scmp.lt.s32.totalorder %s11, 2
      // Predicated region
      $region13: #{tpu_custom_call.1} parent=5 // pred_check
        %p105 = pneg %p104
      $region14: #{tpu_custom_call.1} parent=5 // pred_check_branch
        %107 = sbr.rel (%p105) target = $region16
      $region15: #{tpu_custom_call.1} parent=5 // pred_region
        // Predicated region
        $region17: #{tpu_custom_call.1} parent=15 // pred_check
          %p108 = pneg %p31
        $region18: #{tpu_custom_call.1} parent=15 // pred_check_branch
          %110 = sbr.rel (%p108) target = $region20
        $region19: #{tpu_custom_call.1} parent=15 // pred_region
          %s111 = smul.u32 4, %s11
          %p112 = scmp.lt.s32.totalorder %s111, 7
          %s113 = scalar_select %p112, %s111, 7
          %s114 = smul.addr %s113, 8
          %s115 = scalar_lea.vmem %s0, %s114
          %s116 = smul.u32 4, %s11
        $region20: #{tpu_custom_call.1} parent=15 // pred_fallthru
          _
        // Predicated region
        $region21: #{tpu_custom_call.1} parent=15 // pred_check
          %p117 = pneg %p57
        $region22: #{tpu_custom_call.1} parent=15 // pred_check_branch
          %119 = sbr.rel (%p117) target = $region24
        $region23: #{tpu_custom_call.1} parent=15 // pred_region
          %s120 = smul.u32 4, %s11
          %p121 = scmp.lt.s32.totalorder %s120, 7
          %s122 = scalar_select %p121, %s120, 7
          %s123 = smul.addr %s122, 8
          %s124 = scalar_lea.vmem %s1, %s123
          %s125 = smul.u32 4, %s11
        $region24: #{tpu_custom_call.1} parent=15 // pred_fallthru
          _
      $region16: #{tpu_custom_call.1} parent=5 // pred_fallthru
        _
      %p126 = scmp.le.s32.totalorder 1, %s11
      %p127 = scmp.lt.s32.totalorder %s11, 3
      %p128 = pnand %p126, %p127
      %p129 = pneg %p128
      // Predicated region
      $region25: #{tpu_custom_call.1} parent=5 // pred_check
        _
      $region26: #{tpu_custom_call.1} parent=5 // pred_check_branch
        %131 = sbr.rel (%p128) target = $region28
      $region27: #{tpu_custom_call.1} parent=5 // pred_region
        %s132 = ssub.s32 %s11, 1
        %s133 = smul.u32 4, %s16
        %p134 = scmp.lt.s32.totalorder %s133, 7
        %s135 = scalar_select %p134, %s133, 7
        %s136 = smul.addr %s135, 8
        %s137 = scalar_lea.vmem %s0, %s136
        %p138 = pneg %p37
        %p139 = pneg %p34
        %s140 = smul.u32 4, %s16
        %p141 = scmp.lt.s32.totalorder %s140, 7
        %s142 = scalar_select %p141, %s140, 7
        %s143 = smul.addr %s142, 8
        %s144 = scalar_lea.vmem %s1, %s143
        %p145 = pneg %p63
        %p146 = pneg %p60
        %p147 = pneg %p89
        %p148 = pneg %p86
        %s149 = sand.u32 %s76, 1
        %s150 = scalar_lea.sflag [#allocation3], %s149
        %s151 = sand.u32 %s76, 1
        %s152 = smul.addr %s151, 32
        %s153 = scalar_lea.vmem [#allocation2], %s152
        %s154 = smul.u32 4, %s16
        %p155 = scmp.lt.s32.totalorder %s154, 7
        %s156 = scalar_select %p155, %s154, 7
        %s157 = smul.addr %s156, 8
        %s158 = scalar_lea.vmem %s0, %s157
        %s159 = smul.u32 4, %s16
        %s160 = smul.u32 4, %s16
        %p161 = scmp.lt.s32.totalorder %s160, 7
        %s162 = scalar_select %p161, %s160, 7
        %s163 = smul.addr %s162, 8
        %s164 = scalar_lea.vmem %s1, %s163
        %s165 = smul.u32 4, %s16
        %s166 = smul.u32 4, %s16
        %v167 = vld [vmem:[%s164] sm:$0xff]
        %v168 = vld [vmem:[%s164 + $0x8] sm:$0xff]
        %v169 = vld [vmem:[%s164 + $0x10] sm:$0xff]
        %v170 = vld [vmem:[%s164 + $0x18] sm:$0xff]
        %v171 = vlaneseq
        %v172 = vand.u32 %v171, 127
        %v173 = vand.u32 %v172, 2
        %vm174 = vcmp.eq.s32.totalorder %v173, 0
        %v175 = vand.u32 %v172, 1
        %vm176 = vcmp.eq.s32.totalorder %v175, 0
        %177 = vrot.lane.b32.xlu0 %v167, 2
        %v178 = vpop.permute.xlu0 %177
        %179 = vrot.lane.b32.xlu0 %v168, 2
        %v180 = vpop.permute.xlu0 %179
        %181 = vrot.lane.b32.xlu0 %v169, 2
        %v182 = vpop.permute.xlu0 %181
        %183 = vrot.lane.b32.xlu0 %v170, 2
        %v184 = vpop.permute.xlu0 %183
        %v185 = vsel %vm174, %v167, %v178
        %v186 = vsel %vm174, %v168, %v180
        %v187 = vsel %vm174, %v169, %v182
        %v188 = vsel %vm174, %v170, %v184
        %189 = vrot.lane.b32.xlu0 %v167, 126
        %v190 = vpop.permute.xlu0 %189
        %191 = vrot.lane.b32.xlu0 %v168, 126
        %v192 = vpop.permute.xlu0 %191
        %193 = vrot.lane.b32.xlu0 %v169, 126
        %v194 = vpop.permute.xlu0 %193
        %195 = vrot.lane.b32.xlu0 %v170, 126
        %v196 = vpop.permute.xlu0 %195
        %v197 = vsel %vm174, %v190, %v167
        %v198 = vsel %vm174, %v192, %v168
        %v199 = vsel %vm174, %v194, %v169
        %v200 = vsel %vm174, %v196, %v170
        %v201 = vmax.f32 %v197, -4.1351666
        %v202 = vmax.f32 %v198, -4.1351666
        %v203 = vmax.f32 %v199, -4.1351666
        %v204 = vmax.f32 %v200, -4.1351666
        %v205 = vmin.f32 %v201, 4.1351666
        %v206 = vmin.f32 %v202, 4.1351666
        %v207 = vmin.f32 %v203, 4.1351666
        %v208 = vmin.f32 %v204, 4.1351666
        %v209 = vld [vmem:[%s158] sm:$0xff]
        %v210 = vld [vmem:[%s158 + $0x8] sm:$0xff]
        %v211 = vld [vmem:[%s158 + $0x10] sm:$0xff]
        %v212 = vld [vmem:[%s158 + $0x18] sm:$0xff]
        %217 = vrot.lane.b32.xlu0 %v209, 126
        %v218 = vpop.permute.xlu0 %217
        %219 = vrot.lane.b32.xlu0 %v210, 126
        %v220 = vpop.permute.xlu0 %219
        %221 = vrot.lane.b32.xlu0 %v211, 126
        %v222 = vpop.permute.xlu0 %221
        %223 = vrot.lane.b32.xlu0 %v212, 126
        %v224 = vpop.permute.xlu0 %223
        %v229 = vadd.f32 %v209, %v218
        %v230 = vadd.f32 %v210, %v220
        %v231 = vadd.f32 %v211, %v222
        %v232 = vadd.f32 %v212, %v224
        %v233 = vmul.f32 %v229, 0.5
        %v234 = vmul.f32 %v230, 0.5
        %v235 = vmul.f32 %v231, 0.5
        %v236 = vmul.f32 %v232, 0.5
        %237 = vrot.lane.b32.xlu0 %v209, 2
        %v238 = vpop.permute.xlu0 %237
        %239 = vrot.lane.b32.xlu0 %v210, 2
        %v240 = vpop.permute.xlu0 %239
        %241 = vrot.lane.b32.xlu0 %v211, 2
        %v242 = vpop.permute.xlu0 %241
        %243 = vrot.lane.b32.xlu0 %v212, 2
        %v244 = vpop.permute.xlu0 %243
        %v249 = vsub.f32 %v209, %v238
        %v250 = vsub.f32 %v210, %v240
        %v251 = vsub.f32 %v211, %v242
        %v252 = vsub.f32 %v212, %v244
        %v253 = vadd.f32 %v249, 1.0
        %v254 = vadd.f32 %v250, 1.0
        %v255 = vadd.f32 %v251, 1.0
        %v256 = vadd.f32 %v252, 1.0
        %258 = vset.pattern.permute.xlu0 0
        %259 = vperm.xlu0 %258, %v233
        %v260 = vpop.permute.xlu0 %259
        %263 = vset.pattern.permute.xlu0 0
        %264 = vperm.xlu0 %263, %v234
        %v265 = vpop.permute.xlu0 %264
        %268 = vset.pattern.permute.xlu0 0
        %269 = vperm.xlu0 %268, %v235
        %v270 = vpop.permute.xlu0 %269
        %273 = vset.pattern.permute.xlu0 0
        %274 = vperm.xlu0 %273, %v236
        %v275 = vpop.permute.xlu0 %274
        %277 = vset.pattern.permute.xlu0 1
        %278 = vperm.xlu0 %277, %v233
        %v279 = vpop.permute.xlu0 %278
        %281 = vset.pattern.permute.xlu0 1
        %282 = vperm.xlu0 %281, %v234
        %v283 = vpop.permute.xlu0 %282
        %285 = vset.pattern.permute.xlu0 1
        %286 = vperm.xlu0 %285, %v235
        %v287 = vpop.permute.xlu0 %286
        %289 = vset.pattern.permute.xlu0 1
        %290 = vperm.xlu0 %289, %v236
        %v291 = vpop.permute.xlu0 %290
        %v293 = vsel %vm176, %v260, %v279
        %v294 = vsel %vm176, %v265, %v283
        %v295 = vsel %vm176, %v270, %v287
        %v296 = vsel %vm176, %v275, %v291
        %298 = vset.pattern.permute.xlu0 2
        %299 = vperm.xlu0 %298, %v253
        %v300 = vpop.permute.xlu0 %299
        %303 = vset.pattern.permute.xlu0 2
        %304 = vperm.xlu0 %303, %v254
        %v305 = vpop.permute.xlu0 %304
        %308 = vset.pattern.permute.xlu0 2
        %309 = vperm.xlu0 %308, %v255
        %v310 = vpop.permute.xlu0 %309
        %313 = vset.pattern.permute.xlu0 2
        %314 = vperm.xlu0 %313, %v256
        %v315 = vpop.permute.xlu0 %314
        %317 = vset.pattern.permute.xlu0 3
        %318 = vperm.xlu0 %317, %v253
        %v319 = vpop.permute.xlu0 %318
        %321 = vset.pattern.permute.xlu0 3
        %322 = vperm.xlu0 %321, %v254
        %v323 = vpop.permute.xlu0 %322
        %325 = vset.pattern.permute.xlu0 3
        %326 = vperm.xlu0 %325, %v255
        %v327 = vpop.permute.xlu0 %326
        %329 = vset.pattern.permute.xlu0 3
        %330 = vperm.xlu0 %329, %v256
        %v331 = vpop.permute.xlu0 %330
        %v333 = vsel %vm176, %v300, %v319
        %v334 = vsel %vm176, %v305, %v323
        %v335 = vsel %vm176, %v310, %v327
        %v336 = vsel %vm176, %v315, %v331
        %v337 = vsel %vm174, -0.5, 0.5
        %v338 = vmul.f32 %v333, %v185
        %v339 = vmul.f32 %v334, %v186
        %v340 = vmul.f32 %v335, %v187
        %v341 = vmul.f32 %v336, %v188
        %v342 = vadd.f32 %v293, %v338
        %v343 = vadd.f32 %v294, %v339
        %v344 = vadd.f32 %v295, %v340
        %v345 = vadd.f32 %v296, %v341
        %v346 = vmul.f32 %v205, 1.442695
        %v347 = vpow.pop %v346
        %v348 = vmul.f32 %v206, 1.442695
        %v349 = vpow.pop %v348
        %v350 = vmul.f32 %v207, 1.442695
        %v351 = vpow.pop %v350
        %v352 = vmul.f32 %v208, 1.442695
        %v353 = vpow.pop %v352
        %v354 = vmul.f32 %v333, %v347
        %v355 = vmul.f32 %v334, %v349
        %v356 = vmul.f32 %v335, %v351
        %v357 = vmul.f32 %v336, %v353
        %v358 = vsub.f32 %v354, 1.0
        %v359 = vsub.f32 %v355, 1.0
        %v360 = vsub.f32 %v356, 1.0
        %v361 = vsub.f32 %v357, 1.0
        %v362 = vmul.f32 %v337, %v358
        %v363 = vmul.f32 %v337, %v359
        %v364 = vmul.f32 %v337, %v360
        %v365 = vmul.f32 %v337, %v361
        %v366 = vadd.f32 %v342, %v362
        %v367 = vadd.f32 %v343, %v363
        %v368 = vadd.f32 %v344, %v364
        %v369 = vadd.f32 %v345, %v365
        %370 = vst [vmem:[%s153] sm:$0xff] %v366
        %371 = vst [vmem:[%s153 + $0x8] sm:$0xff] %v367
        %372 = vst [vmem:[%s153 + $0x10] sm:$0xff] %v368
        %373 = vst [vmem:[%s153 + $0x18] sm:$0xff] %v369
        %s374 = sand.u32 %s76, 1
        %s375 = scalar_lea.sflag [#allocation3], %s374
        %s376 = sand.u32 %s76, 1
        %s377 = smul.addr %s376, 32
        %s378 = scalar_lea.vmem [#allocation2], %s377
        // Predicated region
        $region29: #{tpu_custom_call.1} parent=27 // pred_check
          %p379 = pneg %p86
        $region30: #{tpu_custom_call.1} parent=27 // pred_check_branch
          %381 = sbr.rel (%p379) target = $region32
        $region31: #{tpu_custom_call.1} parent=27 // pred_region
          %s382 = smul.u32 4, %s16
          %s384 = ssub.s32 512, 512
          %385 = vsyncadd %s375, %s384
          %s386 = smul.addr %s382, 128
          %s387 = scalar_lea.hbm %s2, %s386
          %s388 = sshll.u32 %s378, 4
          %s389 = int_to_ptr.vmem [resolvable:$true] %s388
          %394 = dma.vmem_to_hbm [thread:$0]  %s389, 512, %s387, %s375, 128, 128, 8
        $region32: #{tpu_custom_call.1} parent=27 // pred_fallthru
          _
      $region28: #{tpu_custom_call.1} parent=5 // pred_fallthru
        _
      %p395 = scmp.le.s32.totalorder 2, %s11
      // Predicated region
      $region33: #{tpu_custom_call.1} parent=5 // pred_check
        %p396 = pneg %p395
      $region34: #{tpu_custom_call.1} parent=5 // pred_check_branch
        %398 = sbr.rel (%p396) target = $region36
      $region35: #{tpu_custom_call.1} parent=5 // pred_region
        %s399 = ssub.s32 %s11, 2
        // Predicated region
        $region37: #{tpu_custom_call.1} parent=35 // pred_check
          %p400 = pneg %p92
        $region38: #{tpu_custom_call.1} parent=35 // pred_check_branch
          %402 = sbr.rel (%p400) target = $region40
        $region39: #{tpu_custom_call.1} parent=35 // pred_region
          %s403 = sand.u32 %s77, 1
          %s404 = scalar_lea.sflag [#allocation3], %s403
          %s405 = sand.u32 %s77, 1
          %s406 = smul.addr %s405, 32
          %s407 = scalar_lea.vmem [#allocation2], %s406
          %408 = dma.done %s404, 512
        $region40: #{tpu_custom_call.1} parent=35 // pred_fallthru
          _
      $region36: #{tpu_custom_call.1} parent=5 // pred_fallthru
        _
    $region6: #{tpu_custom_call.1} parent=1 // loop_footer
      %s15 = sadd.s32 1, %s11
    $region7: #{tpu_custom_call.1} parent=1 // loop_footer_branch
      %10 = sbr.rel target = $region3
    $region8: #{tpu_custom_call.1} parent=1 // loop_exit
      _
    %409 = vsyncpa [#allocation3], 1
    %s410 = scalar_lea.sflag [#allocation3], 1
    %411 = vsyncpa %s410, 1

</llo_original>
